<compile_context>
chip_gen: v5e
topology: v5e:2x2
jax: 0.10.0
libtpu: 0.0.40
codegen_flags: <defaults>
</compile_context>

<pallas_src>
import jax
import jax.numpy as jnp
from jax.experimental import pallas as pl
from jax.experimental.pallas import tpu as pltpu


_NEG_FILL = -1e30                      # finite "minus infinity" for masked columns
_MAX_BV = 4096                         # vocab tile cap (multiple of 128)
_MAX_TM = 1024                         # row tile cap
_MIB = 1024 * 1024


def _round_up(x, m):
    return ((x + m - 1) // m) * m


def _vmem_budgets():
    """(vmem_limit_bytes, working_set_budget_bytes) per TPU generation."""
    cap = None
    try:
        info = pltpu.get_tpu_info()
        cap = int(getattr(info, "vmem_capacity_bytes", 0)) or None
    except Exception:
        cap = None
    if cap is not None and cap >= 100 * _MIB:
        # 128-MiB-VMEM parts (v5e / v6e): big tiles, fewer grid steps.
        return 96 * _MIB, 48 * _MIB
    # 64-MiB-VMEM parts (v7x) or unknown: leave headroom for compiler scratch.
    return 52 * _MIB, 20 * _MIB


def _choose_tiles(n, v, isz_lg, isz_tg, work_budget):
    """Pick (row_tile, vocab_tile) sized against the per-generation budget."""
    sub = 8 if min(isz_lg, isz_tg) >= 4 else 16
    bv = min(_round_up(v, 128), _MAX_BV)
    # Per-row working-set bytes: both inputs double-buffered at native dtype
    # plus ~16 (row,128) f32 lane-strips for accumulators / live temporaries.
    per_row = 2 * bv * (isz_lg + isz_tg) + 16 * 128 * 4
    tm = max(sub, min(_MAX_TM, work_budget // per_row))
    # >= 2 row grid steps so the "parallel" axis can shard across both v7x
    # TensorCores (and the pipeline has something to overlap).
    tm = min(tm, max(sub, _round_up((n + 1) // 2, sub)))
    tm = max(sub, (tm // sub) * sub)
    return tm, bv


def _make_row_kl_kernel(*, v, bv, tm, needs_mask, cast_dtype, targets_after_softmax):
    """Build the kernel (and scratch count) for the given static config."""
    nstrips = bv // 128

    def _load(ref, j, col_base, lane, fill, cast):
        blk = ref[:, j * 128:(j + 1) * 128]
        if cast is not None and blk.dtype != cast:
            blk = blk.astype(cast)             # reference: targets.to(logits)
        blk = blk.astype(jnp.float32)
        if needs_mask:
            col = col_base + (j * 128) + lane
            blk = jnp.where(col < v, blk, fill)
        return blk

    if not targets_after_softmax:
        # KL_row = W / S_t + (m_x + log S_x) - (m_t + log S_t), accumulated
        # lane-wise:  S = sum_c exp(v_c - m_lane),  W = sum_c exp(t_c-m)(t_c-x_c).
        def kernel(logits_ref, targets_ref, out_ref, m_x, s_x, m_t, s_t, w):
            k = pl.program_id(1)

            @pl.when(k == 0)
            def _init():
                m_x[...] = jnp.full(m_x.shape, _NEG_FILL, m_x.dtype)
                m_t[...] = jnp.full(m_t.shape, _NEG_FILL, m_t.dtype)
                s_x[...] = jnp.zeros(s_x.shape, s_x.dtype)
                s_t[...] = jnp.zeros(s_t.shape, s_t.dtype)
                w[...] = jnp.zeros(w.shape, w.dtype)

            col_base = k * bv
            lane = (jax.lax.broadcasted_iota(jnp.int32, (tm, 128), 1)
                    if needs_mask else None)

            def load_x(j):
                return _load(logits_ref, j, col_base, lane, _NEG_FILL, None)

            def load_t(j):
                return _load(targets_ref, j, col_base, lane, _NEG_FILL, cast_dtype)

            # Pass 1: lane-wise running max over the tile (VALU only).
            mx = load_x(0)
            mt = load_t(0)
            for j in range(1, nstrips):
                mx = jnp.maximum(mx, load_x(j))
                mt = jnp.maximum(mt, load_t(j))
            m_x_new = jnp.maximum(m_x[...], mx)
            m_t_new = jnp.maximum(m_t[...], mt)

            # Rescale running sums once per step (one (tm,128) exp each).
            s_x_acc = s_x[...] * jnp.exp(m_x[...] - m_x_new)
            a_t = jnp.exp(m_t[...] - m_t_new)
            s_t_acc = s_t[...] * a_t
            w_acc = w[...] * a_t

            # Pass 2: lane-wise accumulation (no cross-lane ops in the hot loop).
            for j in range(nstrips):
                xj = load_x(j)
                tj = load_t(j)
                s_x_acc = s_x_acc + jnp.exp(xj - m_x_new)
                e_t = jnp.exp(tj - m_t_new)
                s_t_acc = s_t_acc + e_t
                w_acc = w_acc + e_t * (tj - xj)

            m_x[...] = m_x_new
            s_x[...] = s_x_acc
            m_t[...] = m_t_new
            s_t[...] = s_t_acc
            w[...] = w_acc

            @pl.when(k == pl.num_programs(1) - 1)
            def _finalize():
                m_x_row = jnp.max(m_x[...], axis=-1, keepdims=True)
                s_x_row = jnp.sum(s_x[...] * jnp.exp(m_x[...] - m_x_row),
                                  axis=-1, keepdims=True)
                m_t_row = jnp.max(m_t[...], axis=-1, keepdims=True)
                r_t = jnp.exp(m_t[...] - m_t_row)
                s_t_row = jnp.sum(s_t[...] * r_t, axis=-1, keepdims=True)
                w_row = jnp.sum(w[...] * r_t, axis=-1, keepdims=True)
                out_ref[...] = (w_row / s_t_row
                                + (m_x_row + jnp.log(s_x_row))
                                - (m_t_row + jnp.log(s_t_row)))

        return kernel, 5

    else:
        # loss_row = sum_c t_c*(log max(t_c,1e-12) - x_c) + (sum_c t_c)*(m_x + log S_x)
        def kernel(logits_ref, targets_ref, out_ref, m_x, s_x, acc, tsum):
            k = pl.program_id(1)

            @pl.when(k == 0)
            def _init():
                m_x[...] = jnp.full(m_x.shape, _NEG_FILL, m_x.dtype)
                s_x[...] = jnp.zeros(s_x.shape, s_x.dtype)
                acc[...] = jnp.zeros(acc.shape, acc.dtype)
                tsum[...] = jnp.zeros(tsum.shape, tsum.dtype)

            col_base = k * bv
            lane = (jax.lax.broadcasted_iota(jnp.int32, (tm, 128), 1)
                    if needs_mask else None)

            def load_x(j):
                return _load(logits_ref, j, col_base, lane, _NEG_FILL, None)

            def load_t(j):
                return _load(targets_ref, j, col_base, lane, 0.0, cast_dtype)

            mx = load_x(0)
            for j in range(1, nstrips):
                mx = jnp.maximum(mx, load_x(j))
            m_new = jnp.maximum(m_x[...], mx)

            s_acc = s_x[...] * jnp.exp(m_x[...] - m_new)
            a_acc = acc[...]
            t_acc = tsum[...]
            for j in range(nstrips):
                xj = load_x(j)
                tj = load_t(j)
                s_acc = s_acc + jnp.exp(xj - m_new)
                lt = jnp.log(jnp.maximum(tj, 1e-12))
                a_acc = a_acc + tj * (lt - xj)
                t_acc = t_acc + tj

            m_x[...] = m_new
            s_x[...] = s_acc
            acc[...] = a_acc
            tsum[...] = t_acc

            @pl.when(k == pl.num_programs(1) - 1)
            def _finalize():
                m_row = jnp.max(m_x[...], axis=-1, keepdims=True)
                s_row = jnp.sum(s_x[...] * jnp.exp(m_x[...] - m_row),
                                axis=-1, keepdims=True)
                a_row = jnp.sum(acc[...], axis=-1, keepdims=True)
                t_row = jnp.sum(tsum[...], axis=-1, keepdims=True)
                out_ref[...] = a_row + t_row * (m_row + jnp.log(s_row))

        return kernel, 4


def _kl_row_losses(logits_2d, targets_2d, targets_after_softmax,
                   *, block_rows=None, block_v=None):
    """Per-row KL sums via Pallas.  logits_2d/targets_2d: (N, V).  Returns f32 (N,)."""
    n, v = logits_2d.shape
    isz_lg = jnp.dtype(logits_2d.dtype).itemsize
    isz_tg = jnp.dtype(targets_2d.dtype).itemsize
    vmem_limit, work_budget = _vmem_budgets()
    tm, bv = _choose_tiles(n, v, isz_lg, isz_tg, work_budget)
    if block_rows is not None:
        tm = block_rows
    if block_v is not None:
        bv = block_v
    assert bv % 128 == 0 and tm % 8 == 0

    needs_mask = (v % bv) != 0         # ragged vocab tail handled in-kernel
    kernel, n_scratch = _make_row_kl_kernel(
        v=v, bv=bv, tm=tm, needs_mask=needs_mask,
        cast_dtype=logits_2d.dtype,    # reference: targets.to(logits), done in-kernel
        targets_after_softmax=targets_after_softmax)

    # Output blocks are (tm, 1): tiny vs the 2x(N,V) input traffic, written once
    # per row tile, and avoids any sublane->lane relayout of the row losses.
    out = pl.pallas_call(
        kernel,
        out_shape=jax.ShapeDtypeStruct((n, 1), jnp.float32),
        grid_spec=pltpu.PrefetchScalarGridSpec(
            num_scalar_prefetch=0,
            grid=(pl.cdiv(n, tm), pl.cdiv(v, bv)),   # vocab (reduction) axis last
            in_specs=[
                pl.BlockSpec((tm, bv), lambda i, k: (i, k)),
                pl.BlockSpec((tm, bv), lambda i, k: (i, k)),
            ],
            out_specs=pl.BlockSpec((tm, 1), lambda i, k: (i, 0)),
            scratch_shapes=[pltpu.VMEM((tm, 128), jnp.float32)] * n_scratch,
        ),
        compiler_params=pltpu.CompilerParams(
            dimension_semantics=("parallel", "arbitrary"),
            vmem_limit_bytes=vmem_limit,
        ),
    )(logits_2d, targets_2d)
    return out[:, 0]                   # (N,) f32


class KLDivLoss:
    """JAX/Pallas port of the PyTorch KLDivLoss module."""

    def __init__(self, eps=7e-05, return_scalar: bool = True):
        self.eps = eps                  # unused (matches reference)
        self.return_scalar = return_scalar

    def __call__(self, logits, targets, masks=None, temperature: float = 1.0,
                 targets_after_softmax: bool = False):
        # `temperature` is unused in the reference forward(); kept for parity.
        bzs = logits.shape[0]
        v = logits.shape[-1]
        out_dtype = logits.dtype

        logits_2d = logits.reshape(-1, v)
        targets_2d = targets.reshape(-1, v)    # native dtype; .to(logits) is in-kernel

        row_loss = _kl_row_losses(logits_2d, targets_2d, targets_after_softmax)  # f32

        if self.return_scalar:
            if masks is not None:
                m = masks.reshape(-1).astype(jnp.float32)
                # masked_select(...).mean()  ==  sum(loss*m) / sum(m)
                return (jnp.sum(row_loss * m) / jnp.sum(m)).astype(out_dtype)
            return jnp.mean(row_loss).astype(out_dtype)    # reduce in f32, cast last
        else:
            row_loss = row_loss.astype(out_dtype)
            if masks is not None:
                m = masks.reshape(-1).astype(row_loss.dtype)
                row_loss = row_loss * m
            return row_loss.reshape(bzs, -1)


def _reference_rows(logits_2d, targets_2d, targets_after_softmax):
    """Pure-JAX per-row KL sums, f32 (mirrors the PyTorch reference, incl. .to(logits))."""
    lg = logits_2d.astype(jnp.float32)
    tg = targets_2d.astype(logits_2d.dtype).astype(jnp.float32)
    log_q = jax.nn.log_softmax(lg, axis=-1)
    if targets_after_softmax:
        loss = tg * (jnp.log(jnp.maximum(tg, 1e-12)) - log_q)
    else:
        loss = jax.nn.softmax(tg, -1) * (jax.nn.log_softmax(tg, -1) - log_q)
    return jnp.sum(loss, axis=-1)


def _reference(logits, targets, masks=None, targets_after_softmax=False,
               return_scalar=True):
    bzs = logits.shape[0]
    v = logits.shape[-1]
    loss = _reference_rows(logits.reshape(-1, v), targets.reshape(-1, v),
                           targets_after_softmax)
    if return_scalar:
        if masks is not None:
            m = masks.reshape(-1).astype(jnp.float32)
            return jnp.sum(loss * m) / jnp.sum(m)
        return jnp.mean(loss)
    if masks is not None:
        loss = loss * masks.reshape(-1).astype(loss.dtype)
    return loss.reshape(bzs, -1)


if __name__ == "__main__":
    key = jax.random.PRNGKey(0)
    k1, k2, k3, k4, k5, k6, k7 = jax.random.split(key, 7)

    B, S, V = 2, 8, 128            # batch, sequence, vocab
    logits = jax.random.normal(k1, (B, S, V), dtype=jnp.float32)
    targets = jax.random.normal(k2, (B, S, V), dtype=jnp.float32)
    masks = jax.random.bernoulli(k3, 0.7, (B, S))

    loss_fn = KLDivLoss()

    # scalar, no mask
    out1 = loss_fn(logits, targets)
    ref1 = _reference(logits, targets)
    # scalar, masked
    out2 = loss_fn(logits, targets, masks=masks)
    ref2 = _reference(logits, targets, masks=masks)
    # targets already softmaxed
    soft_t = jax.nn.softmax(targets, axis=-1)
    out3 = loss_fn(logits, soft_t, targets_after_softmax=True)
    ref3 = _reference(logits, soft_t, targets_after_softmax=True)
    # per-row output
    loss_fn_rows = KLDivLoss(return_scalar=False)
    out4 = loss_fn_rows(logits, targets, masks=masks)
    ref4 = _reference(logits, targets, masks=masks, return_scalar=False)

    # Ragged N and V (no padding anywhere): partial edge blocks on both axes,
    # multi-strip lane-wise accumulation, multi-step online logsumexp, and the
    # in-kernel column mask (N=10, V=300, tiles 8x256).
    N2, V2 = 10, 300
    lg2 = jax.random.normal(k4, (N2, V2), dtype=jnp.float32)
    tg2 = jax.random.normal(k5, (N2, V2), dtype=jnp.float32)
    out5 = _kl_row_losses(lg2, tg2, False, block_rows=8, block_v=256)
    ref5 = _reference_rows(lg2, tg2, False)
    soft_t2 = jax.nn.softmax(tg2, axis=-1)
    out6 = _kl_row_losses(lg2, soft_t2, True, block_rows=8, block_v=256)
    ref6 = _reference_rows(lg2, soft_t2, True)

    # Mixed dtypes: bf16 logits, f32 targets -> in-kernel targets.to(logits) cast.
    lg3 = jax.random.normal(k6, (24, 256)).astype(jnp.bfloat16)
    tg3 = jax.random.normal(k7, (24, 256)).astype(jnp.float32)
    out7 = _kl_row_losses(lg3, tg3, False)
    ref7 = _reference_rows(lg3, tg3, False)

    for o in (out1, out2, out3, out4, out5, out6, out7):
        jax.block_until_ready(o)

    assert jnp.allclose(out1, ref1, atol=2e-5, rtol=2e-5)
    assert jnp.allclose(out2, ref2, atol=2e-5, rtol=2e-5)
    assert jnp.allclose(out3, ref3, atol=2e-5, rtol=2e-5)
    assert jnp.allclose(out4, ref4, atol=2e-5, rtol=2e-5)
    assert jnp.allclose(out5, ref5, atol=2e-5, rtol=2e-5)
    assert jnp.allclose(out6, ref6, atol=2e-5, rtol=2e-5)
    assert jnp.allclose(out7, ref7, atol=1e-4, rtol=1e-4)

    print("KERNEL_OK")
</pallas_src>

<mosaic_0001>
module attributes {stable_mosaic.version = 11 : i64} {
  func.func @kernel(%arg0: i32, %arg1: i32, %arg2: memref<8x128xf32, #tpu.memory_space<vmem>>, %arg3: memref<8x128xf32, #tpu.memory_space<vmem>>, %arg4: memref<8x1xf32, #tpu.memory_space<vmem>>, %arg5: memref<8x128xf32, #tpu.memory_space<vmem>>, %arg6: memref<8x128xf32, #tpu.memory_space<vmem>>, %arg7: memref<8x128xf32, #tpu.memory_space<vmem>>, %arg8: memref<8x128xf32, #tpu.memory_space<vmem>>, %arg9: memref<8x128xf32, #tpu.memory_space<vmem>>) attributes {dimension_semantics = [#tpu.dimension_semantics<parallel>, #tpu.dimension_semantics<arbitrary>], iteration_bounds = array<i64: 2, 1>, scalar_prefetch = 0 : i64, scratch_operands = 5 : i64, tpu.core_type = #tpu.core_type<tc>, window_params = [{transform_indices = @transform_0, window_bounds = array<i64: 8, 128>}, {transform_indices = @transform_1, window_bounds = array<i64: 8, 128>}, {transform_indices = @transform_2, window_bounds = array<i64: 8, 1>}]} {
    %c0_i32 = arith.constant 0 : i32
    %0 = arith.cmpi eq, %arg1, %c0_i32 : i32
    %1 = arith.extui %0 : i1 to i32
    %c0_i32_0 = arith.constant 0 : i32
    %2 = arith.cmpi ne, %1, %c0_i32_0 : i32
    scf.if %2 {
      %cst = arith.constant -1.000000e+30 : f32
      %40 = vector.broadcast %cst : f32 to vector<8x128xf32>
      %c0_34 = arith.constant 0 : index
      %c0_35 = arith.constant 0 : index
      %41 = vector.load %arg5[%c0_34, %c0_35] : memref<8x128xf32, #tpu.memory_space<vmem>>, vector<8x128xf32>
      tpu.vector_store %arg5[%c0_34, %c0_35], %40 {strides = array<i32>} : memref<8x128xf32, #tpu.memory_space<vmem>>, vector<8x128xf32>,
      %cst_36 = arith.constant -1.000000e+30 : f32
      %42 = vector.broadcast %cst_36 : f32 to vector<8x128xf32>
      %c0_37 = arith.constant 0 : index
      %c0_38 = arith.constant 0 : index
      %43 = vector.load %arg7[%c0_37, %c0_38] : memref<8x128xf32, #tpu.memory_space<vmem>>, vector<8x128xf32>
      tpu.vector_store %arg7[%c0_37, %c0_38], %42 {strides = array<i32>} : memref<8x128xf32, #tpu.memory_space<vmem>>, vector<8x128xf32>,
      %cst_39 = arith.constant 0.000000e+00 : f32
      %44 = vector.broadcast %cst_39 : f32 to vector<8x128xf32>
      %c0_40 = arith.constant 0 : index
      %c0_41 = arith.constant 0 : index
      %45 = vector.load %arg6[%c0_40, %c0_41] : memref<8x128xf32, #tpu.memory_space<vmem>>, vector<8x128xf32>
      tpu.vector_store %arg6[%c0_40, %c0_41], %44 {strides = array<i32>} : memref<8x128xf32, #tpu.memory_space<vmem>>, vector<8x128xf32>,
      %cst_42 = arith.constant 0.000000e+00 : f32
      %46 = vector.broadcast %cst_42 : f32 to vector<8x128xf32>
      %c0_43 = arith.constant 0 : index
      %c0_44 = arith.constant 0 : index
      %47 = vector.load %arg8[%c0_43, %c0_44] : memref<8x128xf32, #tpu.memory_space<vmem>>, vector<8x128xf32>
      tpu.vector_store %arg8[%c0_43, %c0_44], %46 {strides = array<i32>} : memref<8x128xf32, #tpu.memory_space<vmem>>, vector<8x128xf32>,
      %cst_45 = arith.constant 0.000000e+00 : f32
      %48 = vector.broadcast %cst_45 : f32 to vector<8x128xf32>
      %c0_46 = arith.constant 0 : index
      %c0_47 = arith.constant 0 : index
      %49 = vector.load %arg9[%c0_46, %c0_47] : memref<8x128xf32, #tpu.memory_space<vmem>>, vector<8x128xf32>
      tpu.vector_store %arg9[%c0_46, %c0_47], %48 {strides = array<i32>} : memref<8x128xf32, #tpu.memory_space<vmem>>, vector<8x128xf32>,
    } else {
    }
    %c0 = arith.constant 0 : index
    %c0_1 = arith.constant 0 : index
    %3 = vector.load %arg2[%c0, %c0_1] : memref<8x128xf32, #tpu.memory_space<vmem>>, vector<8x128xf32>
    %c0_2 = arith.constant 0 : index
    %c0_3 = arith.constant 0 : index
    %4 = vector.load %arg3[%c0_2, %c0_3] : memref<8x128xf32, #tpu.memory_space<vmem>>, vector<8x128xf32>
    %c0_4 = arith.constant 0 : index
    %c0_5 = arith.constant 0 : index
    %5 = vector.load %arg5[%c0_4, %c0_5] : memref<8x128xf32, #tpu.memory_space<vmem>>, vector<8x128xf32>
    %6 = arith.maximumf %5, %3 : vector<8x128xf32>
    %c0_6 = arith.constant 0 : index
    %c0_7 = arith.constant 0 : index
    %7 = vector.load %arg7[%c0_6, %c0_7] : memref<8x128xf32, #tpu.memory_space<vmem>>, vector<8x128xf32>
    %8 = arith.maximumf %7, %4 : vector<8x128xf32>
    %c0_8 = arith.constant 0 : index
    %c0_9 = arith.constant 0 : index
    %9 = vector.load %arg6[%c0_8, %c0_9] : memref<8x128xf32, #tpu.memory_space<vmem>>, vector<8x128xf32>
    %c0_10 = arith.constant 0 : index
    %c0_11 = arith.constant 0 : index
    %10 = vector.load %arg5[%c0_10, %c0_11] : memref<8x128xf32, #tpu.memory_space<vmem>>, vector<8x128xf32>
    %11 = arith.subf %10, %6 : vector<8x128xf32>
    %12 = math.exp %11 : vector<8x128xf32>
    %13 = arith.mulf %9, %12 : vector<8x128xf32>
    %c0_12 = arith.constant 0 : index
    %c0_13 = arith.constant 0 : index
    %14 = vector.load %arg7[%c0_12, %c0_13] : memref<8x128xf32, #tpu.memory_space<vmem>>, vector<8x128xf32>
    %15 = arith.subf %14, %8 : vector<8x128xf32>
    %16 = math.exp %15 : vector<8x128xf32>
    %c0_14 = arith.constant 0 : index
    %c0_15 = arith.constant 0 : index
    %17 = vector.load %arg8[%c0_14, %c0_15] : memref<8x128xf32, #tpu.memory_space<vmem>>, vector<8x128xf32>
    %18 = arith.mulf %17, %16 : vector<8x128xf32>
    %c0_16 = arith.constant 0 : index
    %c0_17 = arith.constant 0 : index
    %19 = vector.load %arg9[%c0_16, %c0_17] : memref<8x128xf32, #tpu.memory_space<vmem>>, vector<8x128xf32>
    %20 = arith.mulf %19, %16 : vector<8x128xf32>
    %c0_18 = arith.constant 0 : index
    %c0_19 = arith.constant 0 : index
    %21 = vector.load %arg2[%c0_18, %c0_19] : memref<8x128xf32, #tpu.memory_space<vmem>>, vector<8x128xf32>
    %c0_20 = arith.constant 0 : index
    %c0_21 = arith.constant 0 : index
    %22 = vector.load %arg3[%c0_20, %c0_21] : memref<8x128xf32, #tpu.memory_space<vmem>>, vector<8x128xf32>
    %23 = arith.subf %21, %6 : vector<8x128xf32>
    %24 = math.exp %23 : vector<8x128xf32>
    %25 = arith.addf %13, %24 : vector<8x128xf32>
    %26 = arith.subf %22, %8 : vector<8x128xf32>
    %27 = math.exp %26 : vector<8x128xf32>
    %28 = arith.addf %18, %27 : vector<8x128xf32>
    %29 = arith.subf %22, %21 : vector<8x128xf32>
    %30 = arith.mulf %27, %29 : vector<8x128xf32>
    %31 = arith.addf %20, %30 : vector<8x128xf32>
    %c0_22 = arith.constant 0 : index
    %c0_23 = arith.constant 0 : index
    %32 = vector.load %arg5[%c0_22, %c0_23] : memref<8x128xf32, #tpu.memory_space<vmem>>, vector<8x128xf32>
    tpu.vector_store %arg5[%c0_22, %c0_23], %6 {strides = array<i32>} : memref<8x128xf32, #tpu.memory_space<vmem>>, vector<8x128xf32>,
    %c0_24 = arith.constant 0 : index
    %c0_25 = arith.constant 0 : index
    %33 = vector.load %arg6[%c0_24, %c0_25] : memref<8x128xf32, #tpu.memory_space<vmem>>, vector<8x128xf32>
    tpu.vector_store %arg6[%c0_24, %c0_25], %25 {strides = array<i32>} : memref<8x128xf32, #tpu.memory_space<vmem>>, vector<8x128xf32>,
    %c0_26 = arith.constant 0 : index
    %c0_27 = arith.constant 0 : index
    %34 = vector.load %arg7[%c0_26, %c0_27] : memref<8x128xf32, #tpu.memory_space<vmem>>, vector<8x128xf32>
    tpu.vector_store %arg7[%c0_26, %c0_27], %8 {strides = array<i32>} : memref<8x128xf32, #tpu.memory_space<vmem>>, vector<8x128xf32>,
    %c0_28 = arith.constant 0 : index
    %c0_29 = arith.constant 0 : index
    %35 = vector.load %arg8[%c0_28, %c0_29] : memref<8x128xf32, #tpu.memory_space<vmem>>, vector<8x128xf32>
    tpu.vector_store %arg8[%c0_28, %c0_29], %28 {strides = array<i32>} : memref<8x128xf32, #tpu.memory_space<vmem>>, vector<8x128xf32>,
    %c0_30 = arith.constant 0 : index
    %c0_31 = arith.constant 0 : index
    %36 = vector.load %arg9[%c0_30, %c0_31] : memref<8x128xf32, #tpu.memory_space<vmem>>, vector<8x128xf32>
    tpu.vector_store %arg9[%c0_30, %c0_31], %31 {strides = array<i32>} : memref<8x128xf32, #tpu.memory_space<vmem>>, vector<8x128xf32>,
    %c0_i32_32 = arith.constant 0 : i32
    %37 = arith.cmpi eq, %arg1, %c0_i32_32 : i32
    %38 = arith.extui %37 : i1 to i32
    %c0_i32_33 = arith.constant 0 : i32
    %39 = arith.cmpi ne, %38, %c0_i32_33 : i32
    scf.if %39 {
      %c0_34 = arith.constant 0 : index
      %c0_35 = arith.constant 0 : index
      %40 = vector.load %arg5[%c0_34, %c0_35] : memref<8x128xf32, #tpu.memory_space<vmem>>, vector<8x128xf32>
      %cst = arith.constant dense<0xFF800000> : vector<8xf32>
      %41 = vector.multi_reduction <maximumf>, %40, %cst [1] : vector<8x128xf32> to vector<8xf32>
      %42 = vector.shape_cast %41 : vector<8xf32> to vector<8x1xf32>
      %c0_36 = arith.constant 0 : index
      %c0_37 = arith.constant 0 : index
      %43 = vector.load %arg6[%c0_36, %c0_37] : memref<8x128xf32, #tpu.memory_space<vmem>>, vector<8x128xf32>
      %c0_38 = arith.constant 0 : index
      %c0_39 = arith.constant 0 : index
      %44 = vector.load %arg5[%c0_38, %c0_39] : memref<8x128xf32, #tpu.memory_space<vmem>>, vector<8x128xf32>
      %45 = vector.broadcast %42 : vector<8x1xf32> to vector<8x128xf32>
      %46 = arith.subf %44, %45 : vector<8x128xf32>
      %47 = math.exp %46 : vector<8x128xf32>
      %48 = arith.mulf %43, %47 : vector<8x128xf32>
      %cst_40 = arith.constant dense<0.000000e+00> : vector<8xf32>
      %49 = vector.multi_reduction <add>, %48, %cst_40 [1] : vector<8x128xf32> to vector<8xf32>
      %50 = vector.shape_cast %49 : vector<8xf32> to vector<8x1xf32>
      %c0_41 = arith.constant 0 : index
      %c0_42 = arith.constant 0 : index
      %51 = vector.load %arg7[%c0_41, %c0_42] : memref<8x128xf32, #tpu.memory_space<vmem>>, vector<8x128xf32>
      %cst_43 = arith.constant dense<0xFF800000> : vector<8xf32>
      %52 = vector.multi_reduction <maximumf>, %51, %cst_43 [1] : vector<8x128xf32> to vector<8xf32>
      %53 = vector.shape_cast %52 : vector<8xf32> to vector<8x1xf32>
      %c0_44 = arith.constant 0 : index
      %c0_45 = arith.constant 0 : index
      %54 = vector.load %arg7[%c0_44, %c0_45] : memref<8x128xf32, #tpu.memory_space<vmem>>, vector<8x128xf32>
      %55 = vector.broadcast %53 : vector<8x1xf32> to vector<8x128xf32>
      %56 = arith.subf %54, %55 : vector<8x128xf32>
      %57 = math.exp %56 : vector<8x128xf32>
      %c0_46 = arith.constant 0 : index
      %c0_47 = arith.constant 0 : index
      %58 = vector.load %arg8[%c0_46, %c0_47] : memref<8x128xf32, #tpu.memory_space<vmem>>, vector<8x128xf32>
      %59 = arith.mulf %58, %57 : vector<8x128xf32>
      %cst_48 = arith.constant dense<0.000000e+00> : vector<8xf32>
      %60 = vector.multi_reduction <add>, %59, %cst_48 [1] : vector<8x128xf32> to vector<8xf32>
      %61 = vector.shape_cast %60 : vector<8xf32> to vector<8x1xf32>
      %c0_49 = arith.constant 0 : index
      %c0_50 = arith.constant 0 : index
      %62 = vector.load %arg9[%c0_49, %c0_50] : memref<8x128xf32, #tpu.memory_space<vmem>>, vector<8x128xf32>
      %63 = arith.mulf %62, %57 : vector<8x128xf32>
      %cst_51 = arith.constant dense<0.000000e+00> : vector<8xf32>
      %64 = vector.multi_reduction <add>, %63, %cst_51 [1] : vector<8x128xf32> to vector<8xf32>
      %65 = vector.shape_cast %64 : vector<8xf32> to vector<8x1xf32>
      %66 = arith.divf %65, %61 : vector<8x1xf32>
      %67 = math.log %50 : vector<8x1xf32>
      %68 = arith.addf %42, %67 : vector<8x1xf32>
      %69 = arith.addf %66, %68 : vector<8x1xf32>
      %70 = math.log %61 : vector<8x1xf32>
      %71 = arith.addf %53, %70 : vector<8x1xf32>
      %72 = arith.subf %69, %71 : vector<8x1xf32>
      %c0_52 = arith.constant 0 : index
      %c0_53 = arith.constant 0 : index
      %73 = vector.load %arg4[%c0_52, %c0_53] : memref<8x1xf32, #tpu.memory_space<vmem>>, vector<8x1xf32>
      tpu.vector_store %arg4[%c0_52, %c0_53], %72 {strides = array<i32>} : memref<8x1xf32, #tpu.memory_space<vmem>>, vector<8x1xf32>,
    } else {
    }
    return
  }
  func.func @transform_0(%arg0: i32, %arg1: i32) -> (i32, i32) {
    %c0_i32 = arith.constant 0 : i32
    return %arg0, %arg1 : i32, i32
  }
  func.func @transform_1(%arg0: i32, %arg1: i32) -> (i32, i32) {
    %c0_i32 = arith.constant 0 : i32
    return %arg0, %arg1 : i32, i32
  }
  func.func @transform_2(%arg0: i32, %arg1: i32) -> (i32, i32) {
    %c0_i32 = arith.constant 0 : i32
    %c0_i32_0 = arith.constant 0 : i32
    return %arg0, %c0_i32 : i32, i32
  }
}

</mosaic_0001>

<llo_original>
// kernel: tpu_custom_call.1
$region0: #{tpu_custom_call.1}
  #allocation0 [shape = 'u32[]', space=smem, size = 0x4, offset = 0x4, fixed_abs, tag = 'smem constant byte address 0x4 - core index']
  #allocation1 [shape = 'u32[72,128]{1,0:T(1,128)}', space=vmem, size = 0x9000, scoped, tag = 'internal scratch']
  #allocation2 [shape = 'f32[8,128]{1,0:T(8,128)}', space=vmem, size = 0x1000, scoped, tag = 'scratch operand']
  #allocation3 [shape = 'f32[8,128]{1,0:T(8,128)}', space=vmem, size = 0x1000, scoped, tag = 'scratch operand']
  #allocation4 [shape = 'f32[8,128]{1,0:T(8,128)}', space=vmem, size = 0x1000, scoped, tag = 'scratch operand']
  #allocation5 [shape = 'f32[8,128]{1,0:T(8,128)}', space=vmem, size = 0x1000, scoped, tag = 'scratch operand']
  #allocation6 [shape = 'f32[8,128]{1,0:T(8,128)}', space=vmem, size = 0x1000, scoped, tag = 'scratch operand']
  %s0 = inlined_call_operand.hbm [shape: f32[16,128], index: 0, kind: input, shape index: {}]
  %s1 = inlined_call_operand.hbm [shape: f32[16,128], index: 1, kind: input, shape index: {}]
  %s2 = inlined_call_operand.vmem [shape: f32[16,1], index: 2, kind: output, shape index: {}]
  %s3 = sld [smem:[#allocation0]]
  $region57: #{tpu_custom_call.1} parent=0
    _
  %s5 = ssub.s32 1, %s3
  %s6 = scalar_select 0, %s5, %s3
  $region1: #{tpu_custom_call.1} parent=0
    #allocation7 [shape = 'u8[8192]{0}', space=vmem, size = 0x2000, scoped, tag = 'input window, operand 0']
    #allocation8 [shape = 's32[2]{0}', space=sflag, size = 0x8, scoped, tag = 'scoped memory for tpu_custom_call.1']
    #allocation9 [shape = 'u8[8192]{0}', space=vmem, size = 0x2000, scoped, tag = 'input window, operand 1']
    #allocation10 [shape = 's32[2]{0}', space=sflag, size = 0x8, scoped, tag = 'scoped memory for tpu_custom_call.1']
    %7 = vsyncpa [#allocation8], 0
    %s8 = scalar_lea.sflag [#allocation8], 1
    %9 = vsyncpa %s8, 0
    %10 = vsyncpa [#allocation10], 0
    %s11 = scalar_lea.sflag [#allocation10], 1
    %12 = vsyncpa %s11, 0
    loop: start=0, step=1, limit=4
    $region2: #{tpu_custom_call.1} parent=1 // loop_pre_header
      _
    $region3: #{tpu_custom_call.1} parent=1 // loop_header
      %s14 = sphi 0, %s18
      %p15 = scmp.ge.s32.totalorder %s14, 4
      %s21 = sphi 0, %s33
      %s22 = sphi 0, %s29
      %s23 = sphi 0, %s21
      %s24 = sphi 0, %s22
      %s25 = sphi 0, %s23
      %s26 = sphi 0, %s24
      %s38 = sphi 0, %s40
      %s41 = sphi 0, %s38
      %s42 = sphi 0, %s41
      %s58 = sphi 0, %s42
      %s66 = sphi 0, %s68
      %s69 = sphi 0, %s66
      %s70 = sphi 0, %s69
      %s86 = sphi 0, %s70
      %s92 = sphi 0, %s94
      %s95 = sphi 0, %s92
      %s96 = sphi 0, %s95
      %s112 = sphi 0, %s96
    $region4: #{tpu_custom_call.1} parent=1 // loop_header_branch
      %17 = sbr.rel (%p15) target = $region8
    $region5: #{tpu_custom_call.1} parent=1 // loop_body
      %s19 = ssub.s32 %s14, 1
      %s20 = ssub.s32 %s14, 2
      %s27 = sadd.s32 1, %s22
      %p28 = scmp.ge.s32.totalorder %s27, 1
      %s29 = scalar_select %p28, 0, %s27
      %s30 = sadd.s32 1, %s21
      %s31 = scalar_select %p28, %s30, %s21
      %p32 = scmp.ge.s32.totalorder %s31, 2
      %s33 = scalar_select %p32, 0, %s31
      %s34 = ssub.s32 %s21, %s33
      %s35 = ssub.s32 %s22, %s29
      %s36 = sor.u32 %s34, %s35
      %p37 = scmp.eq.s32.totalorder %s36, 0
      %s39 = sadd.s32 %s38, 1
      %s40 = scalar_select %p37, %s38, %s39
      %p43 = pneg %p37
      %p44 = scmp.eq.s32.totalorder %s14, 1
      %p45 = por %p43, %p44
      %p46 = scmp.ne.s32.totalorder %s38, %s41
      %p47 = scmp.eq.s32.totalorder %s14, 0
      %p48 = por %p46, %p47
      %p49 = scmp.ne.s32.totalorder %s38, %s41
      %p50 = scmp.eq.s32.totalorder %s19, 1
      %p51 = por %p49, %p50
      %p52 = scmp.ne.s32.totalorder %s41, %s42
      %p53 = scmp.eq.s32.totalorder %s19, 0
      %p54 = por %p52, %p53
      %p55 = scmp.ne.s32.totalorder %s41, %s42
      %p56 = scmp.eq.s32.totalorder %s20, 1
      %p57 = por %p55, %p56
      %p59 = scmp.ne.s32.totalorder %s42, %s58
      %p60 = scmp.eq.s32.totalorder %s20, 0
      %p61 = por %p59, %p60
      %s62 = ssub.s32 %s21, %s33
      %s63 = ssub.s32 %s22, %s29
      %s64 = sor.u32 %s62, %s63
      %p65 = scmp.eq.s32.totalorder %s64, 0
      %s67 = sadd.s32 %s66, 1
      %s68 = scalar_select %p65, %s66, %s67
      %p71 = pneg %p65
      %p72 = scmp.eq.s32.totalorder %s14, 1
      %p73 = por %p71, %p72
      %p74 = scmp.ne.s32.totalorder %s66, %s69
      %p75 = scmp.eq.s32.totalorder %s14, 0
      %p76 = por %p74, %p75
      %p77 = scmp.ne.s32.totalorder %s66, %s69
      %p78 = scmp.eq.s32.totalorder %s19, 1
      %p79 = por %p77, %p78
      %p80 = scmp.ne.s32.totalorder %s69, %s70
      %p81 = scmp.eq.s32.totalorder %s19, 0
      %p82 = por %p80, %p81
      %p83 = scmp.ne.s32.totalorder %s69, %s70
      %p84 = scmp.eq.s32.totalorder %s20, 1
      %p85 = por %p83, %p84
      %p87 = scmp.ne.s32.totalorder %s70, %s86
      %p88 = scmp.eq.s32.totalorder %s20, 0
      %p89 = por %p87, %p88
      %s90 = ssub.s32 %s21, %s33
      %p91 = scmp.eq.s32.totalorder %s90, 0
      %s93 = sadd.s32 %s92, 1
      %s94 = scalar_select %p91, %s92, %s93
      %p97 = pneg %p91
      %p98 = scmp.eq.s32.totalorder %s14, 1
      %p99 = por %p97, %p98
      %p100 = scmp.ne.s32.totalorder %s92, %s95
      %p101 = scmp.eq.s32.totalorder %s14, 0
      %p102 = por %p100, %p101
      %p103 = scmp.ne.s32.totalorder %s92, %s95
      %p104 = scmp.eq.s32.totalorder %s19, 1
      %p105 = por %p103, %p104
      %p106 = scmp.ne.s32.totalorder %s95, %s96
      %p107 = scmp.eq.s32.totalorder %s19, 0
      %p108 = por %p106, %p107
      %p109 = scmp.ne.s32.totalorder %s95, %s96
      %p110 = scmp.eq.s32.totalorder %s20, 1
      %p111 = por %p109, %p110
      %p113 = scmp.ne.s32.totalorder %s96, %s112
      %p114 = scmp.eq.s32.totalorder %s20, 0
      %p115 = por %p113, %p114
      %p116 = scmp.le.s32.totalorder 1, %s14
      %p117 = scmp.lt.s32.totalorder %s14, 3
      %p118 = pnand %p116, %p117
      %p119 = pneg %p118
      // Predicated region
      $region9: #{tpu_custom_call.1} parent=5 // pred_check
        _
      $region10: #{tpu_custom_call.1} parent=5 // pred_check_branch
        %121 = sbr.rel (%p118) target = $region12
      $region11: #{tpu_custom_call.1} parent=5 // pred_region
        %s122 = ssub.s32 %s14, 1
      $region12: #{tpu_custom_call.1} parent=5 // pred_fallthru
        _
      %p123 = scmp.lt.s32.totalorder %s14, 2
      // Predicated region
      $region13: #{tpu_custom_call.1} parent=5 // pred_check
        %p124 = pneg %p123
      $region14: #{tpu_custom_call.1} parent=5 // pred_check_branch
        %126 = sbr.rel (%p124) target = $region16
      $region15: #{tpu_custom_call.1} parent=5 // pred_region
        // Predicated region
        $region17: #{tpu_custom_call.1} parent=15 // pred_check
          %p127 = pneg %p48
        $region18: #{tpu_custom_call.1} parent=15 // pred_check_branch
          %129 = sbr.rel (%p127) target = $region20
        $region19: #{tpu_custom_call.1} parent=15 // pred_region
          %s130 = sand.u32 %s38, 1
          %s131 = scalar_lea.sflag [#allocation8], %s130
          %s132 = sand.u32 %s38, 1
          %s133 = smul.addr %s132, 8
          %s134 = scalar_lea.vmem [#allocation7], %s133
          %136 = vsyncadd %s131, 0
          %s137 = sadd.s32 %s22, %s21
          %s138 = smul.addr %s137, 8
          %s139 = scalar_lea.hbm %s0, %s138
          %s141 = sshll.u32 %s139, 4
          %s142 = int_to_ptr.hbm [resolvable:$true] %s141
          %s143 = sshll.u32 %s134, 4
          %s144 = int_to_ptr.vmem [resolvable:$true] %s143
          %146 = dma.hbm_to_vmem [thread:$0]  %s142, 128, %s144, %s131
        $region20: #{tpu_custom_call.1} parent=15 // pred_fallthru
          _
        // Predicated region
        $region21: #{tpu_custom_call.1} parent=15 // pred_check
          %p147 = pneg %p76
        $region22: #{tpu_custom_call.1} parent=15 // pred_check_branch
          %149 = sbr.rel (%p147) target = $region24
        $region23: #{tpu_custom_call.1} parent=15 // pred_region
          %s150 = sand.u32 %s66, 1
          %s151 = scalar_lea.sflag [#allocation10], %s150
          %s152 = sand.u32 %s66, 1
          %s153 = smul.addr %s152, 8
          %s154 = scalar_lea.vmem [#allocation9], %s153
          %156 = vsyncadd %s151, 0
          %s157 = sadd.s32 %s22, %s21
          %s158 = smul.addr %s157, 8
          %s159 = scalar_lea.hbm %s1, %s158
          %s161 = sshll.u32 %s159, 4
          %s162 = int_to_ptr.hbm [resolvable:$true] %s161
          %s163 = sshll.u32 %s154, 4
          %s164 = int_to_ptr.vmem [resolvable:$true] %s163
          %166 = dma.hbm_to_vmem [thread:$0]  %s162, 128, %s164, %s151
        $region24: #{tpu_custom_call.1} parent=15 // pred_fallthru
          _
      $region16: #{tpu_custom_call.1} parent=5 // pred_fallthru
        _
      %p167 = scmp.le.s32.totalorder 1, %s14
      %p168 = scmp.lt.s32.totalorder %s14, 3
      %p169 = pnand %p167, %p168
      %p170 = pneg %p169
      // Predicated region
      $region25: #{tpu_custom_call.1} parent=5 // pred_check
        _
      $region26: #{tpu_custom_call.1} parent=5 // pred_check_branch
        %172 = sbr.rel (%p169) target = $region28
      $region27: #{tpu_custom_call.1} parent=5 // pred_region
        %s173 = ssub.s32 %s14, 1
        %s174 = sand.u32 %s41, 1
        %s175 = scalar_lea.sflag [#allocation8], %s174
        %s176 = sand.u32 %s41, 1
        %s177 = smul.addr %s176, 8
        %s178 = scalar_lea.vmem [#allocation7], %s177
        // Predicated region
        $region29: #{tpu_custom_call.1} parent=27 // pred_check
          %p179 = pneg %p54
        $region30: #{tpu_custom_call.1} parent=27 // pred_check_branch
          %181 = sbr.rel (%p179) target = $region32
        $region31: #{tpu_custom_call.1} parent=27 // pred_region
          %183 = dma.done %s175, 128
        $region32: #{tpu_custom_call.1} parent=27 // pred_fallthru
          _
        %s184 = sand.u32 %s69, 1
        %s185 = scalar_lea.sflag [#allocation10], %s184
        %s186 = sand.u32 %s69, 1
        %s187 = smul.addr %s186, 8
        %s188 = scalar_lea.vmem [#allocation9], %s187
        // Predicated region
        $region33: #{tpu_custom_call.1} parent=27 // pred_check
          %p189 = pneg %p82
        $region34: #{tpu_custom_call.1} parent=27 // pred_check_branch
          %191 = sbr.rel (%p189) target = $region36
        $region35: #{tpu_custom_call.1} parent=27 // pred_region
          %193 = dma.done %s185, 128
        $region36: #{tpu_custom_call.1} parent=27 // pred_fallthru
          _
        %s194 = sand.u32 %s41, 1
        %s195 = scalar_lea.sflag [#allocation8], %s194
        %s196 = sand.u32 %s41, 1
        %s197 = smul.addr %s196, 8
        %s198 = scalar_lea.vmem [#allocation7], %s197
        %p199 = pneg %p54
        %p200 = pneg %p51
        %s201 = sand.u32 %s69, 1
        %s202 = scalar_lea.sflag [#allocation10], %s201
        %s203 = sand.u32 %s69, 1
        %s204 = smul.addr %s203, 8
        %s205 = scalar_lea.vmem [#allocation9], %s204
        %p206 = pneg %p82
        %p207 = pneg %p79
        %p208 = pneg %p108
        %p209 = pneg %p105
        %p210 = scmp.lt.s32.totalorder %s23, 1
        %s211 = scalar_select %p210, %s23, 1
        %s212 = smul.addr %s211, 8
        %s213 = scalar_lea.vmem %s2, %s212
        %p214 = scmp.lt.s32.totalorder %s23, 1
        %s215 = scalar_select %p214, %s23, 1
        %s216 = smul.addr %s215, 8
        %s217 = scalar_lea.vmem %s2, %s216
        %p218 = scmp.eq.s32.totalorder %s24, 0
        // Predicated region
        $region37: #{tpu_custom_call.1} parent=27 // pred_check
          %p219 = pneg %p218
        $region38: #{tpu_custom_call.1} parent=27 // pred_check_branch
          %221 = sbr.rel (%p219) target = $region40
        $region39: #{tpu_custom_call.1} parent=27 // pred_region
          %222 = vst [vmem:[#allocation2] sm:$0xff] -1e+30
          %223 = vst [vmem:[#allocation4] sm:$0xff] -1e+30
          %224 = vst [vmem:[#allocation3] sm:$0xff] 0.0
          %225 = vst [vmem:[#allocation5] sm:$0xff] 0.0
          %226 = vst [vmem:[#allocation6] sm:$0xff] 0.0
        $region40: #{tpu_custom_call.1} parent=27 // pred_fallthru
          _
        %v227 = vld [vmem:[%s178] sm:$0xff]
        %v228 = vld [vmem:[%s188] sm:$0xff]
        %v229 = vld [vmem:[#allocation2] sm:$0xff]
        %v230 = vmax.f32 %v229, %v227
        %v231 = vld [vmem:[#allocation4] sm:$0xff]
        %v232 = vmax.f32 %v231, %v228
        %v233 = vld [vmem:[#allocation3] sm:$0xff]
        %v234 = vsub.f32 %v229, %v230
        %v235 = vmul.f32 %v234, 1.442695
        %v236 = vpow.pop %v235
        %v237 = vmul.f32 %v233, %v236
        %v238 = vsub.f32 %v231, %v232
        %v239 = vmul.f32 %v238, 1.442695
        %v240 = vpow.pop %v239
        %v241 = vld [vmem:[#allocation5] sm:$0xff]
        %v242 = vmul.f32 %v241, %v240
        %v243 = vld [vmem:[#allocation6] sm:$0xff]
        %v244 = vmul.f32 %v243, %v240
        %v245 = vsub.f32 %v227, %v230
        %v246 = vmul.f32 %v245, 1.442695
        %v247 = vpow.pop %v246
        %v248 = vadd.f32 %v237, %v247
        %v249 = vsub.f32 %v228, %v232
        %v250 = vmul.f32 %v249, 1.442695
        %v251 = vpow.pop %v250
        %v252 = vadd.f32 %v242, %v251
        %v253 = vsub.f32 %v228, %v227
        %v254 = vmul.f32 %v251, %v253
        %v255 = vadd.f32 %v244, %v254
        %256 = vst [vmem:[#allocation2] sm:$0xff] %v230
        %257 = vst [vmem:[#allocation3] sm:$0xff] %v248
        %258 = vst [vmem:[#allocation4] sm:$0xff] %v232
        %259 = vst [vmem:[#allocation5] sm:$0xff] %v252
        %260 = vst [vmem:[#allocation6] sm:$0xff] %v255
        // Predicated region
        $region41: #{tpu_custom_call.1} parent=27 // pred_check
          %p261 = pneg %p218
        $region42: #{tpu_custom_call.1} parent=27 // pred_check_branch
          %263 = sbr.rel (%p261) target = $region44
        $region43: #{tpu_custom_call.1} parent=27 // pred_region
          %v264 = vld [vmem:[#allocation2] sm:$0xff]
          %265 = vmax.xlane.f32.xlu0 %v264
          %v266 = vpop.xlane.xlu0 %265
          %v267 = vld [vmem:[#allocation3] sm:$0xff]
          %v268 = vsub.f32 %v264, %v266
          %v269 = vmul.f32 %v268, 1.442695
          %v270 = vpow.pop %v269
          %v271 = vmul.f32 %v267, %v270
          %272 = vadd.xlane.f32.xlu0 %v271
          %v273 = vpop.xlane.xlu0 %272
          %v274 = vld [vmem:[#allocation4] sm:$0xff]
          %275 = vmax.xlane.f32.xlu0 %v274
          %v276 = vpop.xlane.xlu0 %275
          %v277 = vsub.f32 %v274, %v276
          %v278 = vmul.f32 %v277, 1.442695
          %v279 = vpow.pop %v278
          %v280 = vld [vmem:[#allocation5] sm:$0xff]
          %v281 = vmul.f32 %v280, %v279
          %282 = vadd.xlane.f32.xlu0 %v281
          %v283 = vpop.xlane.xlu0 %282
          %v284 = vld [vmem:[#allocation6] sm:$0xff]
          %v285 = vmul.f32 %v284, %v279
          %286 = vadd.xlane.f32.xlu0 %v285
          %v287 = vpop.xlane.xlu0 %286
          %v288 = vrcp.pop %v283
          %v289 = vmul.f32 %v283, %v288
          %v290 = vsub.f32 1.0, %v289
          %v291 = vmul.f32 %v288, %v290
          %v292 = vadd.f32 %v288, %v291
          %vm293 = vweird.f32 %v283
          %vm294 = vweird.f32 %v288
          %vm295 = vmor %vm293, %vm294
          %v296 = vsel %vm295, %v288, %v292
          %v297 = vand.u32 2147483647, %v283
          %vm298 = vcmp.eq.f32.partialorder %v297, 8.507059e+37
          %v299 = vand.u32 %v283, 2147483648
          %v300 = vor.u32 1.1754944e-38, %v299
          %v301 = vsel %vm298, %v300, %v296
          %v302 = vmul.f32 %v287, %v301
          %v303 = vlog2.pop %v273
          %v304 = vmul.f32 %v303, 0.6931472
          %v305 = vadd.f32 %v266, %v304
          %v306 = vadd.f32 %v302, %v305
          %v307 = vlog2.pop %v283
          %v308 = vmul.f32 %v307, 0.6931472
          %v309 = vadd.f32 %v276, %v308
          %v310 = vsub.f32 %v306, %v309
          %vm311 = vcmask 7168
          %312 = vst.msk [vmem:[%s217] sm:$0xff] %vm311, %v310
        $region44: #{tpu_custom_call.1} parent=27 // pred_fallthru
          _
        %p313 = scmp.lt.s32.totalorder %s23, 1
        %s314 = scalar_select %p313, %s23, 1
        %s315 = smul.addr %s314, 8
        %s316 = scalar_lea.vmem %s2, %s315
        // Predicated region
        $region45: #{tpu_custom_call.1} parent=27 // pred_check
          %p317 = pneg %p105
        $region46: #{tpu_custom_call.1} parent=27 // pred_check_branch
          %319 = sbr.rel (%p317) target = $region48
        $region47: #{tpu_custom_call.1} parent=27 // pred_region
          _
        $region48: #{tpu_custom_call.1} parent=27 // pred_fallthru
          _
      $region28: #{tpu_custom_call.1} parent=5 // pred_fallthru
        _
      %p320 = scmp.le.s32.totalorder 2, %s14
      // Predicated region
      $region49: #{tpu_custom_call.1} parent=5 // pred_check
        %p321 = pneg %p320
      $region50: #{tpu_custom_call.1} parent=5 // pred_check_branch
        %323 = sbr.rel (%p321) target = $region52
      $region51: #{tpu_custom_call.1} parent=5 // pred_region
        %s324 = ssub.s32 %s14, 2
        // Predicated region
        $region53: #{tpu_custom_call.1} parent=51 // pred_check
          %p325 = pneg %p111
        $region54: #{tpu_custom_call.1} parent=51 // pred_check_branch
          %327 = sbr.rel (%p325) target = $region56
        $region55: #{tpu_custom_call.1} parent=51 // pred_region
          %p328 = scmp.lt.s32.totalorder %s25, 1
          %s329 = scalar_select %p328, %s25, 1
          %s330 = smul.addr %s329, 8
          %s331 = scalar_lea.vmem %s2, %s330
        $region56: #{tpu_custom_call.1} parent=51 // pred_fallthru
          _
      $region52: #{tpu_custom_call.1} parent=5 // pred_fallthru
        _
    $region6: #{tpu_custom_call.1} parent=1 // loop_footer
      %s18 = sadd.s32 1, %s14
    $region7: #{tpu_custom_call.1} parent=1 // loop_footer_branch
      %13 = sbr.rel target = $region3
    $region8: #{tpu_custom_call.1} parent=1 // loop_exit
      _
    %332 = vsyncpa [#allocation8], 1
    %s333 = scalar_lea.sflag [#allocation8], 1
    %334 = vsyncpa %s333, 1
    %335 = vsyncpa [#allocation10], 1
    %s336 = scalar_lea.sflag [#allocation10], 1
    %337 = vsyncpa %s336, 1

</llo_original>
